<compile_context>
chip_gen: v7x
topology: tpu7x:2x2x1
jax: 0.10.0
libtpu: 0.0.40
codegen_flags: <defaults>
</compile_context>

<pallas_src>
import functools

import jax
import jax.numpy as jnp
import numpy as np
from jax.experimental import pallas as pl
from jax.experimental.pallas import tpu as pltpu


# ---------------------------------------------------------------------------
# Tile selection
# ---------------------------------------------------------------------------
# <=2 MiB per F tile: F-in and F'-out each double-buffered -> ~8 MiB of streaming VMEM
# plus the small resident W / sigmoid(lambda) / gamma / bias / mask blocks. Comfortable
# on v5e/v6e (32 MiB scoped) and v7x (64 MiB physical).
_TARGET_F_TILE_BYTES = 2 * 1024 * 1024


def _round_up(x, m):
    return ((x + m - 1) // m) * m


def _hidden_tiles(hidden_size, total_size):
    t_pad = _round_up(total_size, 128)          # lane-dense synapse axis (last dim)
    if hidden_size > 256:
        bh = 128                                # lane/sublane friendly H blocks
        h_pad = _round_up(hidden_size, bh)
    else:
        h_pad = _round_up(hidden_size, 8)       # sublane aligned, single H block
        bh = h_pad
    return h_pad, t_pad, bh


def _batch_tiles(batch, bh, t_pad):
    row_bytes = bh * t_pad * 4                  # f32 bytes of one batch row of an F tile
    bb = max(8, (_TARGET_F_TILE_BYTES // max(row_bytes, 1)) // 8 * 8)
    bb = min(bb, _round_up(batch, 8))
    b_pad = _round_up(batch, bb)
    return b_pad, bb


# ---------------------------------------------------------------------------
# Kernel
# ---------------------------------------------------------------------------
def _stpn_energy_kernel(pre_ref, F_ref, W_ref, siglam_ref, gam_ref, bias_ref, mask_ref,
                        h_out_ref, F_out_ref, e_out_ref):
    pre = pre_ref[...]                           # (bB, T)      pre-synaptic vector [x, h]
    F = F_ref[...]                               # (bB, bH, T)  plastic (fast) weights
    G = W_ref[...][None, :, :] + F               # (bB, bH, T)  effective per-sample weights

    # Single product shared by the energy path and the pre-activation path.
    t = G * pre[:, None, :]                      # (bB, bH, T)

    # ---- energy: |G*pre_e| == mask*|G*pre| for the {0,1} mask.
    # Reduce over H first (VPU adds, lanes intact), apply the (1,T) mask once,
    # then one cross-lane reduce over T per batch row.
    abs_h = jnp.sum(jnp.abs(t), axis=1)                                  # (bB, T)
    e_part = jnp.sum(abs_h * mask_ref[...], axis=-1, keepdims=True)      # (bB, 1)

    @pl.when(pl.program_id(1) == 0)
    def _init():
        e_out_ref[...] = jnp.zeros_like(e_out_ref)

    e_out_ref[...] += e_part                     # output block resident across the H axis

    # ---- recurrent step: h' = tanh(G @ pre + b)
    h_new = jnp.tanh(jnp.sum(t, axis=-1) + bias_ref[...])                # (bB, bH)
    h_out_ref[...] = h_new

    # ---- plasticity: F' = sigmoid(lambda) * F + gamma * outer(h', pre)
    # sigmoid(lambda) is precomputed in the wrapper (hoisted off the per-step EUP path).
    F_out_ref[...] = (siglam_ref[...][None, :, :] * F
                      + gam_ref[...][None, :, :] * (h_new[:, :, None] * pre[:, None, :]))


# ---------------------------------------------------------------------------
# Jitted forward (padding + pallas_call + unpadding)
# ---------------------------------------------------------------------------
@functools.partial(jax.jit, static_argnames=("bB", "bH"))
def _stpn_forward(x, h, F, W_p, siglam_p, gam_p, bias_p, mask_p, *, bB, bH):
    B, I = x.shape
    H = h.shape[1]
    T = I + H
    H_pad, T_pad = W_p.shape
    B_pad = _round_up(B, bB)
    nb, nh = B_pad // bB, H_pad // bH

    # glue: concat [x, h]; zero-pad lanes/sublanes only if the shapes demand it
    # (padded lanes of `pre` and padded rows of W/F are 0 -> they contribute nothing
    # to energy / pre-activation / outer product).
    pre = jnp.concatenate([x.astype(jnp.float32), h.astype(jnp.float32)], axis=-1)
    if (B_pad, T_pad) != (B, T):
        pre_p = jnp.pad(pre, ((0, B_pad - B), (0, T_pad - T)))
    else:
        pre_p = pre
    F32 = F.astype(jnp.float32)
    if (B_pad, H_pad, T_pad) != (B, H, T):
        F_p = jnp.pad(F32, ((0, B_pad - B), (0, H_pad - H), (0, T_pad - T)))
    else:
        F_p = F32

    cost = pl.CostEstimate(
        flops=int(9 * B_pad * H_pad * T_pad),
        transcendentals=int(B_pad * H_pad),
        bytes_accessed=int(4 * (2 * B_pad * H_pad * T_pad              # F in + F' out
                                + 3 * nb * H_pad * T_pad               # W / sig(lam) / gamma
                                + 2 * B_pad * T_pad + 2 * B_pad * H_pad)),
    )

    h_new_p, F_new_p, e_p = pl.pallas_call(
        _stpn_energy_kernel,
        out_shape=(
            jax.ShapeDtypeStruct((B_pad, H_pad), jnp.float32),
            jax.ShapeDtypeStruct((B_pad, H_pad, T_pad), jnp.float32),
            jax.ShapeDtypeStruct((B_pad, 1), jnp.float32),
        ),
        grid_spec=pltpu.PrefetchScalarGridSpec(
            num_scalar_prefetch=0,
            grid=(nb, nh),                                              # H (energy reduce) last
            in_specs=[
                pl.BlockSpec((bB, T_pad), lambda i, j: (i, 0)),         # pre  (resident over j)
                pl.BlockSpec((bB, bH, T_pad), lambda i, j: (i, j, 0)),  # F    (streamed, dominant)
                pl.BlockSpec((bH, T_pad), lambda i, j: (j, 0)),         # W
                pl.BlockSpec((bH, T_pad), lambda i, j: (j, 0)),         # sigmoid(lambda)
                pl.BlockSpec((bH, T_pad), lambda i, j: (j, 0)),         # gamma
                pl.BlockSpec((1, bH), lambda i, j: (0, j)),             # bias
                pl.BlockSpec((1, T_pad), lambda i, j: (0, 0)),          # energy mask (resident)
            ],
            out_specs=(
                pl.BlockSpec((bB, bH), lambda i, j: (i, j)),            # h'
                pl.BlockSpec((bB, bH, T_pad), lambda i, j: (i, j, 0)),  # F'
                pl.BlockSpec((bB, 1), lambda i, j: (i, 0)),             # energy accumulator
            ),
        ),
        input_output_aliases={1: 1},                                    # F buffer reused for F'
        compiler_params=pltpu.CompilerParams(
            dimension_semantics=("parallel", "arbitrary"),
            vmem_limit_bytes=32 * 1024 * 1024,
        ),
        cost_estimate=cost,
    )(pre_p, F_p, W_p, siglam_p, gam_p, bias_p, mask_p)

    return h_new_p[:B, :H], F_new_p[:B, :H, :T], e_p[:B]


# ---------------------------------------------------------------------------
# Module wrapper
# ---------------------------------------------------------------------------
class NetParallelEnergyPallas:
    """JAX/Pallas port of NetParallelEnergy(rnn_type='stpn', activation='tanh')."""

    def __init__(self, input_size, hidden_size, zero_idx_energy=None, key=None):
        self.input_size = input_size
        self.hidden_size = hidden_size
        self.total_size = input_size + hidden_size
        self.zero_idx_energy = zero_idx_energy
        if key is None:
            key = jax.random.PRNGKey(0)
        kW, kL, kG, kB = jax.random.split(key, 4)
        scale = 1.0 / np.sqrt(self.total_size)
        self.W = jax.random.uniform(kW, (hidden_size, self.total_size), jnp.float32,
                                    -scale, scale)
        self.lambdas = jax.random.normal(kL, (hidden_size, self.total_size), jnp.float32)
        self.gammas = 0.1 * jax.random.normal(kG, (hidden_size, self.total_size), jnp.float32)
        self.bias = jax.random.uniform(kB, (hidden_size,), jnp.float32, -scale, scale)

        # static energy mask on the input part (x_energy[:, zero_idx] = 0)
        mask = np.ones((input_size,), np.float32)
        if zero_idx_energy is not None:
            mask[np.asarray(zero_idx_energy)] = 0.0
        self.energy_mask = jnp.asarray(mask)

        # ---- padded / precomputed parameter tensors (hoisted out of the kernel) ----
        H, T = hidden_size, self.total_size
        self.H_pad, self.T_pad, self.bH = _hidden_tiles(H, T)
        z = jnp.zeros((self.H_pad, self.T_pad), jnp.float32)
        self.W_p = z.at[:H, :T].set(self.W)
        self.siglam_p = z.at[:H, :T].set(jax.nn.sigmoid(self.lambdas))   # hoisted sigmoid
        self.gam_p = z.at[:H, :T].set(self.gammas)
        self.bias_p = jnp.zeros((1, self.H_pad), jnp.float32).at[0, :H].set(self.bias)
        # full-length {0,1} energy mask over [x, h]; binary mask makes |G*pre_e|==mask*|G*pre|
        mask_full = jnp.concatenate([self.energy_mask, jnp.ones((H,), jnp.float32)])
        self.mask_p = jnp.zeros((1, self.T_pad), jnp.float32).at[0, :T].set(mask_full)

    def __call__(self, x, states):
        h, F = states
        B = x.shape[0]
        _, bB = _batch_tiles(B, self.bH, self.T_pad)
        h_new, F_new, energy = _stpn_forward(
            x, h, F, self.W_p, self.siglam_p, self.gam_p, self.bias_p, self.mask_p,
            bB=bB, bH=self.bH)
        return h_new, (h_new, F_new), energy


# ---------------------------------------------------------------------------
# Pure-JAX reference (correctness check)
# ---------------------------------------------------------------------------
def reference_forward(net, x, states):
    h, F = states
    pre = jnp.concatenate([x, h], axis=-1)
    pre_e = jnp.concatenate([x * net.energy_mask[None, :], h], axis=-1)
    G = net.W[None] + F
    energy = jnp.sum(jnp.abs(G * pre_e[:, None, :]), axis=(1, 2))[:, None]
    h_new = jnp.tanh(jnp.sum(G * pre[:, None, :], axis=-1) + net.bias[None, :])
    F_new = jax.nn.sigmoid(net.lambdas)[None] * F \
        + net.gammas[None] * (h_new[:, :, None] * pre[:, None, :])
    return h_new, (h_new, F_new), energy


if __name__ == "__main__":
    B, input_size, hidden_size = 2, 16, 32
    T = input_size + hidden_size

    root = jax.random.PRNGKey(0)
    k_params, k_x, k_h, k_F = jax.random.split(root, 4)

    net = NetParallelEnergyPallas(input_size, hidden_size,
                                  zero_idx_energy=[0, 3], key=k_params)

    x = jax.random.normal(k_x, (B, input_size), jnp.float32)
    h0 = jax.random.normal(k_h, (B, hidden_size), jnp.float32)
    F0 = 0.05 * jax.random.normal(k_F, (B, hidden_size, T), jnp.float32)
    states = (h0, F0)

    h_new, states_new, energy = net(x, states)
    jax.block_until_ready((h_new, states_new, energy))

    h_ref, states_ref, e_ref = reference_forward(net, x, states)
    np.testing.assert_allclose(np.asarray(h_new), np.asarray(h_ref), rtol=1e-5, atol=1e-5)
    np.testing.assert_allclose(np.asarray(states_new[1]), np.asarray(states_ref[1]),
                               rtol=1e-5, atol=1e-5)
    np.testing.assert_allclose(np.asarray(energy), np.asarray(e_ref), rtol=1e-4, atol=1e-4)

    print("KERNEL_OK")
</pallas_src>

<mosaic_0001>
module attributes {stable_mosaic.version = 11 : i64} {
  func.func @_stpn_energy_kernel(%arg0: i32, %arg1: i32, %arg2: memref<8x128xf32, #tpu.memory_space<vmem>>, %arg3: memref<8x32x128xf32, #tpu.memory_space<vmem>>, %arg4: memref<32x128xf32, #tpu.memory_space<vmem>>, %arg5: memref<32x128xf32, #tpu.memory_space<vmem>>, %arg6: memref<32x128xf32, #tpu.memory_space<vmem>>, %arg7: memref<1x32xf32, #tpu.memory_space<vmem>>, %arg8: memref<1x128xf32, #tpu.memory_space<vmem>>, %arg9: memref<8x32xf32, #tpu.memory_space<vmem>>, %arg10: memref<8x32x128xf32, #tpu.memory_space<vmem>>, %arg11: memref<8x1xf32, #tpu.memory_space<vmem>>) attributes {dimension_semantics = [#tpu.dimension_semantics<parallel>, #tpu.dimension_semantics<arbitrary>], iteration_bounds = array<i64: 1, 1>, scalar_prefetch = 0 : i64, scratch_operands = 0 : i64, tpu.core_type = #tpu.core_type<tc>, window_params = [{transform_indices = @transform_0, window_bounds = array<i64: 8, 128>}, {transform_indices = @transform_1, window_bounds = array<i64: 8, 32, 128>}, {transform_indices = @transform_2, window_bounds = array<i64: 32, 128>}, {transform_indices = @transform_3, window_bounds = array<i64: 32, 128>}, {transform_indices = @transform_4, window_bounds = array<i64: 32, 128>}, {transform_indices = @transform_5, window_bounds = array<i64: 1, 32>}, {pipeline_mode = #tpu.pipeline_mode<synchronous>, transform_indices = @transform_6, window_bounds = array<i64: 1, 128>}, {transform_indices = @transform_7, window_bounds = array<i64: 8, 32>}, {transform_indices = @transform_8, window_bounds = array<i64: 8, 32, 128>}, {transform_indices = @transform_9, window_bounds = array<i64: 8, 1>}]} {
    %c0 = arith.constant 0 : index
    %c0_0 = arith.constant 0 : index
    %0 = vector.load %arg2[%c0, %c0_0] : memref<8x128xf32, #tpu.memory_space<vmem>>, vector<8x128xf32>
    %c0_1 = arith.constant 0 : index
    %c0_2 = arith.constant 0 : index
    %c0_3 = arith.constant 0 : index
    %1 = vector.load %arg3[%c0_1, %c0_2, %c0_3] : memref<8x32x128xf32, #tpu.memory_space<vmem>>, vector<8x32x128xf32>
    %c0_4 = arith.constant 0 : index
    %c0_5 = arith.constant 0 : index
    %2 = vector.load %arg4[%c0_4, %c0_5] : memref<32x128xf32, #tpu.memory_space<vmem>>, vector<32x128xf32>
    %3 = vector.shape_cast %2 : vector<32x128xf32> to vector<1x32x128xf32>
    %4 = vector.broadcast %3 : vector<1x32x128xf32> to vector<8x32x128xf32>
    %5 = arith.addf %4, %1 : vector<8x32x128xf32>
    %6 = vector.shape_cast %0 : vector<8x128xf32> to vector<8x1x128xf32>
    %7 = vector.broadcast %6 : vector<8x1x128xf32> to vector<8x32x128xf32>
    %8 = arith.mulf %5, %7 : vector<8x32x128xf32>
    %9 = math.absf %8 : vector<8x32x128xf32>
    %cst = arith.constant dense<0.000000e+00> : vector<8x128xf32>
    %10 = vector.multi_reduction <add>, %9, %cst [1] : vector<8x32x128xf32> to vector<8x128xf32>
    %c0_6 = arith.constant 0 : index
    %c0_7 = arith.constant 0 : index
    %11 = vector.load %arg8[%c0_6, %c0_7] : memref<1x128xf32, #tpu.memory_space<vmem>>, vector<1x128xf32>
    %12 = vector.broadcast %11 : vector<1x128xf32> to vector<8x128xf32>
    %13 = arith.mulf %10, %12 : vector<8x128xf32>
    %cst_8 = arith.constant dense<0.000000e+00> : vector<8xf32>
    %14 = vector.multi_reduction <add>, %13, %cst_8 [1] : vector<8x128xf32> to vector<8xf32>
    %15 = vector.shape_cast %14 : vector<8xf32> to vector<8x1xf32>
    %c0_i32 = arith.constant 0 : i32
    %16 = arith.cmpi eq, %arg1, %c0_i32 : i32
    %17 = arith.extui %16 : i1 to i32
    %c0_i32_9 = arith.constant 0 : i32
    %18 = arith.cmpi ne, %17, %c0_i32_9 : i32
    scf.if %18 {
      %cst_26 = arith.constant 0.000000e+00 : f32
      %43 = vector.broadcast %cst_26 : f32 to vector<8x1xf32>
      %c0_27 = arith.constant 0 : index
      %c0_28 = arith.constant 0 : index
      %44 = vector.load %arg11[%c0_27, %c0_28] : memref<8x1xf32, #tpu.memory_space<vmem>>, vector<8x1xf32>
      tpu.vector_store %arg11[%c0_27, %c0_28], %43 {strides = array<i32>} : memref<8x1xf32, #tpu.memory_space<vmem>>, vector<8x1xf32>,
    } else {
    }
    %c0_10 = arith.constant 0 : index
    %c0_11 = arith.constant 0 : index
    %19 = vector.load %arg11[%c0_10, %c0_11] : memref<8x1xf32, #tpu.memory_space<vmem>>, vector<8x1xf32>
    %20 = arith.addf %19, %15 : vector<8x1xf32>
    %c0_12 = arith.constant 0 : index
    %c0_13 = arith.constant 0 : index
    %21 = vector.load %arg11[%c0_12, %c0_13] : memref<8x1xf32, #tpu.memory_space<vmem>>, vector<8x1xf32>
    tpu.vector_store %arg11[%c0_12, %c0_13], %20 {strides = array<i32>} : memref<8x1xf32, #tpu.memory_space<vmem>>, vector<8x1xf32>,
    %cst_14 = arith.constant dense<0.000000e+00> : vector<8x32xf32>
    %22 = vector.multi_reduction <add>, %8, %cst_14 [2] : vector<8x32x128xf32> to vector<8x32xf32>
    %c0_15 = arith.constant 0 : index
    %c0_16 = arith.constant 0 : index
    %23 = vector.load %arg7[%c0_15, %c0_16] : memref<1x32xf32, #tpu.memory_space<vmem>>, vector<1x32xf32>
    %24 = vector.broadcast %23 : vector<1x32xf32> to vector<8x32xf32>
    %25 = arith.addf %22, %24 : vector<8x32xf32>
    %26 = math.tanh %25 : vector<8x32xf32>
    %c0_17 = arith.constant 0 : index
    %c0_18 = arith.constant 0 : index
    %27 = vector.load %arg9[%c0_17, %c0_18] : memref<8x32xf32, #tpu.memory_space<vmem>>, vector<8x32xf32>
    tpu.vector_store %arg9[%c0_17, %c0_18], %26 {strides = array<i32>} : memref<8x32xf32, #tpu.memory_space<vmem>>, vector<8x32xf32>,
    %c0_19 = arith.constant 0 : index
    %c0_20 = arith.constant 0 : index
    %28 = vector.load %arg5[%c0_19, %c0_20] : memref<32x128xf32, #tpu.memory_space<vmem>>, vector<32x128xf32>
    %29 = vector.shape_cast %28 : vector<32x128xf32> to vector<1x32x128xf32>
    %30 = vector.broadcast %29 : vector<1x32x128xf32> to vector<8x32x128xf32>
    %31 = arith.mulf %30, %1 : vector<8x32x128xf32>
    %c0_21 = arith.constant 0 : index
    %c0_22 = arith.constant 0 : index
    %32 = vector.load %arg6[%c0_21, %c0_22] : memref<32x128xf32, #tpu.memory_space<vmem>>, vector<32x128xf32>
    %33 = vector.shape_cast %32 : vector<32x128xf32> to vector<1x32x128xf32>
    %34 = vector.shape_cast %26 : vector<8x32xf32> to vector<8x32x1xf32>
    %35 = vector.shape_cast %0 : vector<8x128xf32> to vector<8x1x128xf32>
    %36 = vector.broadcast %34 : vector<8x32x1xf32> to vector<8x32x128xf32>
    %37 = vector.broadcast %35 : vector<8x1x128xf32> to vector<8x32x128xf32>
    %38 = arith.mulf %36, %37 : vector<8x32x128xf32>
    %39 = vector.broadcast %33 : vector<1x32x128xf32> to vector<8x32x128xf32>
    %40 = arith.mulf %39, %38 : vector<8x32x128xf32>
    %41 = arith.addf %31, %40 : vector<8x32x128xf32>
    %c0_23 = arith.constant 0 : index
    %c0_24 = arith.constant 0 : index
    %c0_25 = arith.constant 0 : index
    %42 = vector.load %arg10[%c0_23, %c0_24, %c0_25] : memref<8x32x128xf32, #tpu.memory_space<vmem>>, vector<8x32x128xf32>
    tpu.vector_store %arg10[%c0_23, %c0_24, %c0_25], %41 {strides = array<i32>} : memref<8x32x128xf32, #tpu.memory_space<vmem>>, vector<8x32x128xf32>,
    return
  }
  func.func @transform_0(%arg0: i32, %arg1: i32) -> (i32, i32) {
    %c0_i32 = arith.constant 0 : i32
    %c0_i32_0 = arith.constant 0 : i32
    return %arg0, %c0_i32 : i32, i32
  }
  func.func @transform_1(%arg0: i32, %arg1: i32) -> (i32, i32, i32) {
    %c0_i32 = arith.constant 0 : i32
    %c0_i32_0 = arith.constant 0 : i32
    return %arg0, %arg1, %c0_i32 : i32, i32, i32
  }
  func.func @transform_2(%arg0: i32, %arg1: i32) -> (i32, i32) {
    %c0_i32 = arith.constant 0 : i32
    %c0_i32_0 = arith.constant 0 : i32
    return %arg1, %c0_i32 : i32, i32
  }
  func.func @transform_3(%arg0: i32, %arg1: i32) -> (i32, i32) {
    %c0_i32 = arith.constant 0 : i32
    %c0_i32_0 = arith.constant 0 : i32
    return %arg1, %c0_i32 : i32, i32
  }
  func.func @transform_4(%arg0: i32, %arg1: i32) -> (i32, i32) {
    %c0_i32 = arith.constant 0 : i32
    %c0_i32_0 = arith.constant 0 : i32
    return %arg1, %c0_i32 : i32, i32
  }
  func.func @transform_5(%arg0: i32, %arg1: i32) -> (i32, i32) {
    %c0_i32 = arith.constant 0 : i32
    %c0_i32_0 = arith.constant 0 : i32
    return %c0_i32, %arg1 : i32, i32
  }
  func.func @transform_6(%arg0: i32, %arg1: i32) -> (i32, i32) {
    %c0_i32 = arith.constant 0 : i32
    %c0_i32_0 = arith.constant 0 : i32
    %c0_i32_1 = arith.constant 0 : i32
    return %c0_i32, %c0_i32_0 : i32, i32
  }
  func.func @transform_7(%arg0: i32, %arg1: i32) -> (i32, i32) {
    %c0_i32 = arith.constant 0 : i32
    return %arg0, %arg1 : i32, i32
  }
  func.func @transform_8(%arg0: i32, %arg1: i32) -> (i32, i32, i32) {
    %c0_i32 = arith.constant 0 : i32
    %c0_i32_0 = arith.constant 0 : i32
    return %arg0, %arg1, %c0_i32 : i32, i32, i32
  }
  func.func @transform_9(%arg0: i32, %arg1: i32) -> (i32, i32) {
    %c0_i32 = arith.constant 0 : i32
    %c0_i32_0 = arith.constant 0 : i32
    return %arg0, %c0_i32 : i32, i32
  }
}

</mosaic_0001>

<llo_original>
// kernel: _stpn_forward.1
$region0: #{_stpn_forward.1}
  #allocation0 [shape = 'u32[]', space=smem, size = 0x4, offset = 0x4, fixed_abs, tag = 'smem constant byte address 0x4 - core index']
  #allocation1 [shape = 'u32[144,128]{1,0:T(1,128)}', space=vmem, size = 0x12000, scoped, tag = 'internal scratch']
  %s0 = inlined_call_operand.vmem [shape: f32[8,128], index: 0, kind: input, shape index: {}]
  %s1 = inlined_call_operand.vmem [shape: f32[8,32,128], index: 1, kind: input, shape index: {}, may-alias: {1,8}]
  %s2 = inlined_call_operand.vmem [shape: f32[32,128], index: 2, kind: input, shape index: {}]
  %s3 = inlined_call_operand.vmem [shape: f32[32,128], index: 3, kind: input, shape index: {}]
  %s4 = inlined_call_operand.vmem [shape: f32[32,128], index: 4, kind: input, shape index: {}]
  %s5 = inlined_call_operand.vmem [shape: f32[1,32], index: 5, kind: input, shape index: {}]
  %s6 = inlined_call_operand.vmem [shape: f32[1,128], index: 6, kind: input, shape index: {}]
  %s7 = inlined_call_operand.vmem [shape: f32[8,32], index: 7, kind: output, shape index: {0}]
  %s8 = inlined_call_operand.vmem [shape: f32[8,32,128], index: 8, kind: output, shape index: {1}, may-alias: {1,8}]
  %s9 = inlined_call_operand.vmem [shape: f32[8,1], index: 9, kind: output, shape index: {2}]
  %10 = xla_tuple %s7, %s8, %s9
  %s11 = sld [smem:[#allocation0]]
  $region58: #{_stpn_forward.1} parent=0
    _
  %s13 = ssub.s32 1, %s11
  %s14 = scalar_select 0, %s13, %s11
  // Predicated region
  $region2: #{_stpn_forward.1} parent=0 // pred_check
    _
  $region3: #{_stpn_forward.1} parent=0 // pred_check_branch
    %16 = sbr.rel (0) target = $region5
  $region4: #{_stpn_forward.1} parent=0 // pred_region
    _
  $region5: #{_stpn_forward.1} parent=0 // pred_fallthru
    _
  // Predicated region
  $region6: #{_stpn_forward.1} parent=0 // pred_check
    _
  $region7: #{_stpn_forward.1} parent=0 // pred_check_branch
    %18 = sbr.rel (0) target = $region9
  $region8: #{_stpn_forward.1} parent=0 // pred_region
    _
  $region9: #{_stpn_forward.1} parent=0 // pred_fallthru
    _
  // Predicated region
  $region10: #{_stpn_forward.1} parent=0 // pred_check
    _
  $region11: #{_stpn_forward.1} parent=0 // pred_check_branch
    %20 = sbr.rel (0) target = $region13
  $region12: #{_stpn_forward.1} parent=0 // pred_region
    _
  $region13: #{_stpn_forward.1} parent=0 // pred_fallthru
    _
  // Predicated region
  $region14: #{_stpn_forward.1} parent=0 // pred_check
    _
  $region15: #{_stpn_forward.1} parent=0 // pred_check_branch
    %22 = sbr.rel (0) target = $region17
  $region16: #{_stpn_forward.1} parent=0 // pred_region
    _
  $region17: #{_stpn_forward.1} parent=0 // pred_fallthru
    _
  // Predicated region
  $region18: #{_stpn_forward.1} parent=0 // pred_check
    _
  $region19: #{_stpn_forward.1} parent=0 // pred_check_branch
    %24 = sbr.rel (0) target = $region21
  $region20: #{_stpn_forward.1} parent=0 // pred_region
    _
  $region21: #{_stpn_forward.1} parent=0 // pred_fallthru
    _
  // Predicated region
  $region22: #{_stpn_forward.1} parent=0 // pred_check
    _
  $region23: #{_stpn_forward.1} parent=0 // pred_check_branch
    %26 = sbr.rel (0) target = $region25
  $region24: #{_stpn_forward.1} parent=0 // pred_region
    _
  $region25: #{_stpn_forward.1} parent=0 // pred_fallthru
    _
  // Predicated region
  $region26: #{_stpn_forward.1} parent=0 // pred_check
    _
  $region27: #{_stpn_forward.1} parent=0 // pred_check_branch
    %28 = sbr.rel (0) target = $region29
  $region28: #{_stpn_forward.1} parent=0 // pred_region
    _
  $region29: #{_stpn_forward.1} parent=0 // pred_fallthru
    _
  %v29 = vld [vmem:[%s0] sm:$0xff]
  %v30 = vld [vmem:[%s1] sm:$0xff]
  %v31 = vld [vmem:[%s1 + $0x8] sm:$0xff]
  %v32 = vld [vmem:[%s1 + $0x10] sm:$0xff]
  %v33 = vld [vmem:[%s1 + $0x18] sm:$0xff]
  %v34 = vld [vmem:[%s1 + $0x20] sm:$0xff]
  %v35 = vld [vmem:[%s1 + $0x28] sm:$0xff]
  %v36 = vld [vmem:[%s1 + $0x30] sm:$0xff]
  %v37 = vld [vmem:[%s1 + $0x38] sm:$0xff]
  %v38 = vld [vmem:[%s1 + $0x40] sm:$0xff]
  %v39 = vld [vmem:[%s1 + $0x48] sm:$0xff]
  %v40 = vld [vmem:[%s1 + $0x50] sm:$0xff]
  %v41 = vld [vmem:[%s1 + $0x58] sm:$0xff]
  %v42 = vld [vmem:[%s1 + $0x60] sm:$0xff]
  %v43 = vld [vmem:[%s1 + $0x68] sm:$0xff]
  %v44 = vld [vmem:[%s1 + $0x70] sm:$0xff]
  %v45 = vld [vmem:[%s1 + $0x78] sm:$0xff]
  %v46 = vld [vmem:[%s1 + $0x80] sm:$0xff]
  %v47 = vld [vmem:[%s1 + $0x88] sm:$0xff]
  %v48 = vld [vmem:[%s1 + $0x90] sm:$0xff]
  %v49 = vld [vmem:[%s1 + $0x98] sm:$0xff]
  %v50 = vld [vmem:[%s1 + $0xa0] sm:$0xff]
  %v51 = vld [vmem:[%s1 + $0xa8] sm:$0xff]
  %v52 = vld [vmem:[%s1 + $0xb0] sm:$0xff]
  %v53 = vld [vmem:[%s1 + $0xb8] sm:$0xff]
  %v54 = vld [vmem:[%s1 + $0xc0] sm:$0xff]
  %v55 = vld [vmem:[%s1 + $0xc8] sm:$0xff]
  %v56 = vld [vmem:[%s1 + $0xd0] sm:$0xff]
  %v57 = vld [vmem:[%s1 + $0xd8] sm:$0xff]
  %v58 = vld [vmem:[%s1 + $0xe0] sm:$0xff]
  %v59 = vld [vmem:[%s1 + $0xe8] sm:$0xff]
  %v60 = vld [vmem:[%s1 + $0xf0] sm:$0xff]
  %v61 = vld [vmem:[%s1 + $0xf8] sm:$0xff]
  %v62 = vld [vmem:[%s2] sm:$0xff]
  %v63 = vld [vmem:[%s2 + $0x8] sm:$0xff]
  %v64 = vld [vmem:[%s2 + $0x10] sm:$0xff]
  %v65 = vld [vmem:[%s2 + $0x18] sm:$0xff]
  %v66 = vadd.f32 %v62, %v30
  %v67 = vadd.f32 %v63, %v31
  %v68 = vadd.f32 %v64, %v32
  %v69 = vadd.f32 %v65, %v33
  %v70 = vadd.f32 %v62, %v34
  %v71 = vadd.f32 %v63, %v35
  %v72 = vadd.f32 %v64, %v36
  %v73 = vadd.f32 %v65, %v37
  %v74 = vadd.f32 %v62, %v38
  %v75 = vadd.f32 %v63, %v39
  %v76 = vadd.f32 %v64, %v40
  %v77 = vadd.f32 %v65, %v41
  %v78 = vadd.f32 %v62, %v42
  %v79 = vadd.f32 %v63, %v43
  %v80 = vadd.f32 %v64, %v44
  %v81 = vadd.f32 %v65, %v45
  %v82 = vadd.f32 %v62, %v46
  %v83 = vadd.f32 %v63, %v47
  %v84 = vadd.f32 %v64, %v48
  %v85 = vadd.f32 %v65, %v49
  %v86 = vadd.f32 %v62, %v50
  %v87 = vadd.f32 %v63, %v51
  %v88 = vadd.f32 %v64, %v52
  %v89 = vadd.f32 %v65, %v53
  %v90 = vadd.f32 %v62, %v54
  %v91 = vadd.f32 %v63, %v55
  %v92 = vadd.f32 %v64, %v56
  %v93 = vadd.f32 %v65, %v57
  %v94 = vadd.f32 %v62, %v58
  %v95 = vadd.f32 %v63, %v59
  %v96 = vadd.f32 %v64, %v60
  %v97 = vadd.f32 %v65, %v61
  %v99 = vcombine.high %v29, %v29
  %v101 = vunpack.c.l.s4 1966171168
  %v102 = vunpack.c.0.s8 %v101
  %v103 = vlaneseq
  %v104 = vshrl.u32 %v103, 7
  %v105 = vsub.s32 %v102, %v104
  %v106 = vrot.slane %v29, %v105
  %v108 = vunpack.c.l.s4 1966171168
  %v109 = vunpack.c.0.s8 %v108
  %v110 = vlaneseq
  %v111 = vshrl.u32 %v110, 7
  %v112 = vsub.s32 %v109, %v111
  %v113 = vrot.slane %v99, %v112
  %v114 = vcombine.high %v106, %v106
  %v115 = vcombine.high %v113, %v113
  %v117 = vunpack.c.l.s4 1966171168
  %v118 = vunpack.c.0.s8 %v117
  %v119 = vlaneseq
  %v120 = vshrl.u32 %v119, 7
  %v121 = vsub.s32 %v118, %v120
  %v122 = vrot.slane %v106, %v121
  %v124 = vunpack.c.l.s4 1966171168
  %v125 = vunpack.c.0.s8 %v124
  %v126 = vlaneseq
  %v127 = vshrl.u32 %v126, 7
  %v128 = vsub.s32 %v125, %v127
  %v129 = vrot.slane %v113, %v128
  %v131 = vunpack.c.l.s4 1966171168
  %v132 = vunpack.c.0.s8 %v131
  %v133 = vlaneseq
  %v134 = vshrl.u32 %v133, 7
  %v135 = vsub.s32 %v132, %v134
  %v136 = vrot.slane %v114, %v135
  %v138 = vunpack.c.l.s4 1966171168
  %v139 = vunpack.c.0.s8 %v138
  %v140 = vlaneseq
  %v141 = vshrl.u32 %v140, 7
  %v142 = vsub.s32 %v139, %v141
  %v143 = vrot.slane %v115, %v142
  %v144 = vcombine.high %v122, %v122
  %v145 = vcombine.high %v129, %v129
  %v146 = vcombine.high %v136, %v136
  %v147 = vcombine.high %v143, %v143
  %v148 = vlaneseq
  %v149 = vshrl.u32 %v148, 7
  %v150 = vsub.s32 0, %v149
  %v151 = vrot.slane %v122, %v150
  %v152 = vlaneseq
  %v153 = vshrl.u32 %v152, 7
  %v154 = vsub.s32 0, %v153
  %v155 = vrot.slane %v136, %v154
  %v156 = vlaneseq
  %v157 = vshrl.u32 %v156, 7
  %v158 = vsub.s32 0, %v157
  %v159 = vrot.slane %v144, %v158
  %v160 = vlaneseq
  %v161 = vshrl.u32 %v160, 7
  %v162 = vsub.s32 0, %v161
  %v163 = vrot.slane %v146, %v162
  %v164 = vlaneseq
  %v165 = vshrl.u32 %v164, 7
  %v166 = vsub.s32 0, %v165
  %v167 = vrot.slane %v129, %v166
  %v168 = vlaneseq
  %v169 = vshrl.u32 %v168, 7
  %v170 = vsub.s32 0, %v169
  %v171 = vrot.slane %v143, %v170
  %v172 = vlaneseq
  %v173 = vshrl.u32 %v172, 7
  %v174 = vsub.s32 0, %v173
  %v175 = vrot.slane %v145, %v174
  %v176 = vlaneseq
  %v177 = vshrl.u32 %v176, 7
  %v178 = vsub.s32 0, %v177
  %v179 = vrot.slane %v147, %v178
  %v188 = vmul.f32 %v66, %v151
  %v189 = vmul.f32 %v67, %v151
  %v190 = vmul.f32 %v68, %v151
  %v191 = vmul.f32 %v69, %v151
  %v192 = vmul.f32 %v70, %v155
  %v193 = vmul.f32 %v71, %v155
  %v194 = vmul.f32 %v72, %v155
  %v195 = vmul.f32 %v73, %v155
  %v196 = vmul.f32 %v74, %v159
  %v197 = vmul.f32 %v75, %v159
  %v198 = vmul.f32 %v76, %v159
  %v199 = vmul.f32 %v77, %v159
  %v200 = vmul.f32 %v78, %v163
  %v201 = vmul.f32 %v79, %v163
  %v202 = vmul.f32 %v80, %v163
  %v203 = vmul.f32 %v81, %v163
  %v204 = vmul.f32 %v82, %v167
  %v205 = vmul.f32 %v83, %v167
  %v206 = vmul.f32 %v84, %v167
  %v207 = vmul.f32 %v85, %v167
  %v208 = vmul.f32 %v86, %v171
  %v209 = vmul.f32 %v87, %v171
  %v210 = vmul.f32 %v88, %v171
  %v211 = vmul.f32 %v89, %v171
  %v212 = vmul.f32 %v90, %v175
  %v213 = vmul.f32 %v91, %v175
  %v214 = vmul.f32 %v92, %v175
  %v215 = vmul.f32 %v93, %v175
  %v216 = vmul.f32 %v94, %v179
  %v217 = vmul.f32 %v95, %v179
  %v218 = vmul.f32 %v96, %v179
  %v219 = vmul.f32 %v97, %v179
  %v220 = vand.u32 2147483647, %v188
  %v221 = vand.u32 2147483647, %v189
  %v222 = vand.u32 2147483647, %v190
  %v223 = vand.u32 2147483647, %v191
  %v224 = vand.u32 2147483647, %v192
  %v225 = vand.u32 2147483647, %v193
  %v226 = vand.u32 2147483647, %v194
  %v227 = vand.u32 2147483647, %v195
  %v228 = vand.u32 2147483647, %v196
  %v229 = vand.u32 2147483647, %v197
  %v230 = vand.u32 2147483647, %v198
  %v231 = vand.u32 2147483647, %v199
  %v232 = vand.u32 2147483647, %v200
  %v233 = vand.u32 2147483647, %v201
  %v234 = vand.u32 2147483647, %v202
  %v235 = vand.u32 2147483647, %v203
  %v236 = vand.u32 2147483647, %v204
  %v237 = vand.u32 2147483647, %v205
  %v238 = vand.u32 2147483647, %v206
  %v239 = vand.u32 2147483647, %v207
  %v240 = vand.u32 2147483647, %v208
  %v241 = vand.u32 2147483647, %v209
  %v242 = vand.u32 2147483647, %v210
  %v243 = vand.u32 2147483647, %v211
  %v244 = vand.u32 2147483647, %v212
  %v245 = vand.u32 2147483647, %v213
  %v246 = vand.u32 2147483647, %v214
  %v247 = vand.u32 2147483647, %v215
  %v248 = vand.u32 2147483647, %v216
  %v249 = vand.u32 2147483647, %v217
  %v250 = vand.u32 2147483647, %v218
  %v251 = vand.u32 2147483647, %v219
  %v252 = vadd.f32 %v220, %v221
  %v253 = vadd.f32 %v252, %v222
  %v254 = vadd.f32 %v253, %v223
  %v255 = vrot.slane %v254, 4
  %v256 = vadd.f32 %v254, %v255
  %v257 = vrot.slane %v256, 2
  %v258 = vadd.f32 %v256, %v257
  %v259 = vrot.slane %v258, 1
  %v260 = vadd.f32 %v258, %v259
  %v261 = vadd.f32 %v224, %v225
  %v262 = vadd.f32 %v261, %v226
  %v263 = vadd.f32 %v262, %v227
  %v264 = vrot.slane %v263, 4
  %v265 = vadd.f32 %v263, %v264
  %v266 = vrot.slane %v265, 2
  %v267 = vadd.f32 %v265, %v266
  %v268 = vrot.slane %v267, 1
  %v269 = vadd.f32 %v267, %v268
  %v270 = vadd.f32 %v228, %v229
  %v271 = vadd.f32 %v270, %v230
  %v272 = vadd.f32 %v271, %v231
  %v273 = vrot.slane %v272, 4
  %v274 = vadd.f32 %v272, %v273
  %v275 = vrot.slane %v274, 2
  %v276 = vadd.f32 %v274, %v275
  %v277 = vrot.slane %v276, 1
  %v278 = vadd.f32 %v276, %v277
  %v279 = vadd.f32 %v232, %v233
  %v280 = vadd.f32 %v279, %v234
  %v281 = vadd.f32 %v280, %v235
  %v282 = vrot.slane %v281, 4
  %v283 = vadd.f32 %v281, %v282
  %v284 = vrot.slane %v283, 2
  %v285 = vadd.f32 %v283, %v284
  %v286 = vrot.slane %v285, 1
  %v287 = vadd.f32 %v285, %v286
  %v288 = vadd.f32 %v236, %v237
  %v289 = vadd.f32 %v288, %v238
  %v290 = vadd.f32 %v289, %v239
  %v291 = vrot.slane %v290, 4
  %v292 = vadd.f32 %v290, %v291
  %v293 = vrot.slane %v292, 2
  %v294 = vadd.f32 %v292, %v293
  %v295 = vrot.slane %v294, 1
  %v296 = vadd.f32 %v294, %v295
  %v297 = vadd.f32 %v240, %v241
  %v298 = vadd.f32 %v297, %v242
  %v299 = vadd.f32 %v298, %v243
  %v300 = vrot.slane %v299, 4
  %v301 = vadd.f32 %v299, %v300
  %v302 = vrot.slane %v301, 2
  %v303 = vadd.f32 %v301, %v302
  %v304 = vrot.slane %v303, 1
  %v305 = vadd.f32 %v303, %v304
  %v306 = vadd.f32 %v244, %v245
  %v307 = vadd.f32 %v306, %v246
  %v308 = vadd.f32 %v307, %v247
  %v309 = vrot.slane %v308, 4
  %v310 = vadd.f32 %v308, %v309
  %v311 = vrot.slane %v310, 2
  %v312 = vadd.f32 %v310, %v311
  %v313 = vrot.slane %v312, 1
  %v314 = vadd.f32 %v312, %v313
  %v315 = vadd.f32 %v248, %v249
  %v316 = vadd.f32 %v315, %v250
  %v317 = vadd.f32 %v316, %v251
  %v318 = vrot.slane %v317, 4
  %v319 = vadd.f32 %v317, %v318
  %v320 = vrot.slane %v319, 2
  %v321 = vadd.f32 %v319, %v320
  %v322 = vrot.slane %v321, 1
  %v323 = vadd.f32 %v321, %v322
  %v324 = vld [vmem:[%s6] sm:$0x1]
  %v326 = vlaneseq
  %v327 = vshrl.u32 %v326, 7
  %v328 = vsub.s32 0, %v327
  %v329 = vrot.slane %v324, %v328
  %v331 = vmul.f32 %v260, %v329
  %v332 = vmul.f32 %v269, %v329
  %v333 = vmul.f32 %v278, %v329
  %v334 = vmul.f32 %v287, %v329
  %v335 = vmul.f32 %v296, %v329
  %v336 = vmul.f32 %v305, %v329
  %v337 = vmul.f32 %v314, %v329
  %v338 = vmul.f32 %v323, %v329
  %v347 = vrot.slane %v332, 7
  %vm348 = vcmask 1041409
  %v349 = vsel %vm348, %v347, %v331
  %v350 = vrot.slane %v333, 6
  %vm351 = vcmask 1042434
  %v352 = vsel %vm351, %v350, %v349
  %v353 = vrot.slane %v334, 5
  %vm354 = vcmask 1043459
  %v355 = vsel %vm354, %v353, %v352
  %v356 = vrot.slane %v335, 4
  %vm357 = vcmask 1044484
  %v358 = vsel %vm357, %v356, %v355
  %v359 = vrot.slane %v336, 3
  %vm360 = vcmask 1045509
  %v361 = vsel %vm360, %v359, %v358
  %v362 = vrot.slane %v337, 2
  %vm363 = vcmask 1046534
  %v364 = vsel %vm363, %v362, %v361
  %v365 = vrot.slane %v338, 1
  %vm366 = vcmask 1047559
  %v367 = vsel %vm366, %v365, %v364
  %369 = vadd.xlane.f32.xlu0 %v367
  %v370 = vpop.xlane.xlu0 %369
  %p371 = scmp.eq.s32.totalorder 0, 0
  // Predicated region
  $region30: #{_stpn_forward.1} parent=0 // pred_check
    %p372 = pneg %p371
  $region31: #{_stpn_forward.1} parent=0 // pred_check_branch
    %374 = sbr.rel (%p372) target = $region33
  $region32: #{_stpn_forward.1} parent=0 // pred_region
    %vm375 = vcmask 7168
    %376 = vst.msk [vmem:[%s9] sm:$0xff] %vm375, 0.0
  $region33: #{_stpn_forward.1} parent=0 // pred_fallthru
    _
  %v377 = vld [vmem:[%s9] sm:$0xff]
  %v378 = vadd.f32 %v377, %v370
  %vm379 = vcmask 7168
  %380 = vst.msk [vmem:[%s9] sm:$0xff] %vm379, %v378
  %381 = vadd.xlane.f32.xlu0 %v188
  %v382 = vpop.xlane.xlu0 %381
  %383 = vadd.xlane.f32.xlu0 %v189
  %v384 = vpop.xlane.xlu0 %383
  %385 = vadd.xlane.f32.xlu0 %v190
  %v386 = vpop.xlane.xlu0 %385
  %387 = vadd.xlane.f32.xlu0 %v191
  %v388 = vpop.xlane.xlu0 %387
  %389 = vadd.xlane.f32.xlu0 %v192
  %v390 = vpop.xlane.xlu0 %389
  %391 = vadd.xlane.f32.xlu0 %v193
  %v392 = vpop.xlane.xlu0 %391
  %393 = vadd.xlane.f32.xlu0 %v194
  %v394 = vpop.xlane.xlu0 %393
  %395 = vadd.xlane.f32.xlu0 %v195
  %v396 = vpop.xlane.xlu0 %395
  %397 = vadd.xlane.f32.xlu0 %v196
  %v398 = vpop.xlane.xlu0 %397
  %399 = vadd.xlane.f32.xlu0 %v197
  %v400 = vpop.xlane.xlu0 %399
  %401 = vadd.xlane.f32.xlu0 %v198
  %v402 = vpop.xlane.xlu0 %401
  %403 = vadd.xlane.f32.xlu0 %v199
  %v404 = vpop.xlane.xlu0 %403
  %405 = vadd.xlane.f32.xlu0 %v200
  %v406 = vpop.xlane.xlu0 %405
  %407 = vadd.xlane.f32.xlu0 %v201
  %v408 = vpop.xlane.xlu0 %407
  %409 = vadd.xlane.f32.xlu0 %v202
  %v410 = vpop.xlane.xlu0 %409
  %411 = vadd.xlane.f32.xlu0 %v203
  %v412 = vpop.xlane.xlu0 %411
  %413 = vadd.xlane.f32.xlu0 %v204
  %v414 = vpop.xlane.xlu0 %413
  %415 = vadd.xlane.f32.xlu0 %v205
  %v416 = vpop.xlane.xlu0 %415
  %417 = vadd.xlane.f32.xlu0 %v206
  %v418 = vpop.xlane.xlu0 %417
  %419 = vadd.xlane.f32.xlu0 %v207
  %v420 = vpop.xlane.xlu0 %419
  %421 = vadd.xlane.f32.xlu0 %v208
  %v422 = vpop.xlane.xlu0 %421
  %423 = vadd.xlane.f32.xlu0 %v209
  %v424 = vpop.xlane.xlu0 %423
  %425 = vadd.xlane.f32.xlu0 %v210
  %v426 = vpop.xlane.xlu0 %425
  %427 = vadd.xlane.f32.xlu0 %v211
  %v428 = vpop.xlane.xlu0 %427
  %429 = vadd.xlane.f32.xlu0 %v212
  %v430 = vpop.xlane.xlu0 %429
  %431 = vadd.xlane.f32.xlu0 %v213
  %v432 = vpop.xlane.xlu0 %431
  %433 = vadd.xlane.f32.xlu0 %v214
  %v434 = vpop.xlane.xlu0 %433
  %435 = vadd.xlane.f32.xlu0 %v215
  %v436 = vpop.xlane.xlu0 %435
  %437 = vadd.xlane.f32.xlu0 %v216
  %v438 = vpop.xlane.xlu0 %437
  %439 = vadd.xlane.f32.xlu0 %v217
  %v440 = vpop.xlane.xlu0 %439
  %441 = vadd.xlane.f32.xlu0 %v218
  %v442 = vpop.xlane.xlu0 %441
  %443 = vadd.xlane.f32.xlu0 %v219
  %v444 = vpop.xlane.xlu0 %443
  %v445 = vld [vmem:[%s5] sm:$0x1]
  %v447 = vlaneseq
  %v448 = vshrl.u32 %v447, 7
  %v449 = vsub.s32 0, %v448
  %v450 = vrot.slane %v445, %v449
  %452 = vbcast.lane.b32.xlu0 %v450, 256
  %v453 = vpop.permute.xlu0 %452
  %s455 = sor.u32 256, 8
  %456 = vbcast.lane.b32.xlu0 %v450, %s455
  %v457 = vpop.permute.xlu0 %456
  %s459 = sor.u32 256, 16
  %460 = vbcast.lane.b32.xlu0 %v450, %s459
  %v461 = vpop.permute.xlu0 %460
  %s463 = sor.u32 256, 24
  %464 = vbcast.lane.b32.xlu0 %v450, %s463
  %v465 = vpop.permute.xlu0 %464
  %v470 = vadd.f32 %v382, %v453
  %v471 = vadd.f32 %v384, %v457
  %v472 = vadd.f32 %v386, %v461
  %v473 = vadd.f32 %v388, %v465
  %v474 = vadd.f32 %v390, %v453
  %v475 = vadd.f32 %v392, %v457
  %v476 = vadd.f32 %v394, %v461
  %v477 = vadd.f32 %v396, %v465
  %v478 = vadd.f32 %v398, %v453
  %v479 = vadd.f32 %v400, %v457
  %v480 = vadd.f32 %v402, %v461
  %v481 = vadd.f32 %v404, %v465
  %v482 = vadd.f32 %v406, %v453
  %v483 = vadd.f32 %v408, %v457
  %v484 = vadd.f32 %v410, %v461
  %v485 = vadd.f32 %v412, %v465
  %v486 = vadd.f32 %v414, %v453
  %v487 = vadd.f32 %v416, %v457
  %v488 = vadd.f32 %v418, %v461
  %v489 = vadd.f32 %v420, %v465
  %v490 = vadd.f32 %v422, %v453
  %v491 = vadd.f32 %v424, %v457
  %v492 = vadd.f32 %v426, %v461
  %v493 = vadd.f32 %v428, %v465
  %v494 = vadd.f32 %v430, %v453
  %v495 = vadd.f32 %v432, %v457
  %v496 = vadd.f32 %v434, %v461
  %v497 = vadd.f32 %v436, %v465
  %v498 = vadd.f32 %v438, %v453
  %v499 = vadd.f32 %v440, %v457
  %v500 = vadd.f32 %v442, %v461
  %v501 = vadd.f32 %v444, %v465
  %v502 = vtanh.pop %v470
  %v503 = vtanh.pop %v471
  %v504 = vtanh.pop %v472
  %v505 = vtanh.pop %v473
  %v506 = vtanh.pop %v474
  %v507 = vtanh.pop %v475
  %v508 = vtanh.pop %v476
  %v509 = vtanh.pop %v477
  %v510 = vtanh.pop %v478
  %v511 = vtanh.pop %v479
  %v512 = vtanh.pop %v480
  %v513 = vtanh.pop %v481
  %v514 = vtanh.pop %v482
  %v515 = vtanh.pop %v483
  %v516 = vtanh.pop %v484
  %v517 = vtanh.pop %v485
  %v518 = vtanh.pop %v486
  %v519 = vtanh.pop %v487
  %v520 = vtanh.pop %v488
  %v521 = vtanh.pop %v489
  %v522 = vtanh.pop %v490
  %v523 = vtanh.pop %v491
  %v524 = vtanh.pop %v492
  %v525 = vtanh.pop %v493
  %v526 = vtanh.pop %v494
  %v527 = vtanh.pop %v495
  %v528 = vtanh.pop %v496
  %v529 = vtanh.pop %v497
  %v530 = vtanh.pop %v498
  %v531 = vtanh.pop %v499
  %v532 = vtanh.pop %v500
  %v533 = vtanh.pop %v501
  %566 = vset.pattern.permute.xlu0 0
  %567 = vperm.xlu0 %566, %v502
  %v568 = vpop.permute.xlu0 %567
  %569 = vset.pattern.permute.xlu0 0
  %570 = vperm.xlu0 %569, %v503
  %v571 = vpop.permute.xlu0 %570
  %572 = vset.pattern.permute.xlu0 0
  %573 = vperm.xlu0 %572, %v504
  %v574 = vpop.permute.xlu0 %573
  %575 = vset.pattern.permute.xlu0 0
  %576 = vperm.xlu0 %575, %v505
  %v577 = vpop.permute.xlu0 %576
  %578 = vset.pattern.permute.xlu0 0
  %579 = vperm.xlu0 %578, %v506
  %v580 = vpop.permute.xlu0 %579
  %581 = vset.pattern.permute.xlu0 0
  %582 = vperm.xlu0 %581, %v507
  %v583 = vpop.permute.xlu0 %582
  %584 = vset.pattern.permute.xlu0 0
  %585 = vperm.xlu0 %584, %v508
  %v586 = vpop.permute.xlu0 %585
  %587 = vset.pattern.permute.xlu0 0
  %588 = vperm.xlu0 %587, %v509
  %v589 = vpop.permute.xlu0 %588
  %590 = vset.pattern.permute.xlu0 0
  %591 = vperm.xlu0 %590, %v510
  %v592 = vpop.permute.xlu0 %591
  %593 = vset.pattern.permute.xlu0 0
  %594 = vperm.xlu0 %593, %v511
  %v595 = vpop.permute.xlu0 %594
  %596 = vset.pattern.permute.xlu0 0
  %597 = vperm.xlu0 %596, %v512
  %v598 = vpop.permute.xlu0 %597
  %599 = vset.pattern.permute.xlu0 0
  %600 = vperm.xlu0 %599, %v513
  %v601 = vpop.permute.xlu0 %600
  %602 = vset.pattern.permute.xlu0 0
  %603 = vperm.xlu0 %602, %v514
  %v604 = vpop.permute.xlu0 %603
  %605 = vset.pattern.permute.xlu0 0
  %606 = vperm.xlu0 %605, %v515
  %v607 = vpop.permute.xlu0 %606
  %608 = vset.pattern.permute.xlu0 0
  %609 = vperm.xlu0 %608, %v516
  %v610 = vpop.permute.xlu0 %609
  %611 = vset.pattern.permute.xlu0 0
  %612 = vperm.xlu0 %611, %v517
  %v613 = vpop.permute.xlu0 %612
  %614 = vset.pattern.permute.xlu0 0
  %615 = vperm.xlu0 %614, %v518
  %v616 = vpop.permute.xlu0 %615
  %617 = vset.pattern.permute.xlu0 0
  %618 = vperm.xlu0 %617, %v519
  %v619 = vpop.permute.xlu0 %618
  %620 = vset.pattern.permute.xlu0 0
  %621 = vperm.xlu0 %620, %v520
  %v622 = vpop.permute.xlu0 %621
  %623 = vset.pattern.permute.xlu0 0
  %624 = vperm.xlu0 %623, %v521
  %v625 = vpop.permute.xlu0 %624
  %626 = vset.pattern.permute.xlu0 0
  %627 = vperm.xlu0 %626, %v522
  %v628 = vpop.permute.xlu0 %627
  %629 = vset.pattern.permute.xlu0 0
  %630 = vperm.xlu0 %629, %v523
  %v631 = vpop.permute.xlu0 %630
  %632 = vset.pattern.permute.xlu0 0
  %633 = vperm.xlu0 %632, %v524
  %v634 = vpop.permute.xlu0 %633
  %635 = vset.pattern.permute.xlu0 0
  %636 = vperm.xlu0 %635, %v525
  %v637 = vpop.permute.xlu0 %636
  %638 = vset.pattern.permute.xlu0 0
  %639 = vperm.xlu0 %638, %v526
  %v640 = vpop.permute.xlu0 %639
  %641 = vset.pattern.permute.xlu0 0
  %642 = vperm.xlu0 %641, %v527
  %v643 = vpop.permute.xlu0 %642
  %644 = vset.pattern.permute.xlu0 0
  %645 = vperm.xlu0 %644, %v528
  %v646 = vpop.permute.xlu0 %645
  %647 = vset.pattern.permute.xlu0 0
  %648 = vperm.xlu0 %647, %v529
  %v649 = vpop.permute.xlu0 %648
  %650 = vset.pattern.permute.xlu0 0
  %651 = vperm.xlu0 %650, %v530
  %v652 = vpop.permute.xlu0 %651
  %653 = vset.pattern.permute.xlu0 0
  %654 = vperm.xlu0 %653, %v531
  %v655 = vpop.permute.xlu0 %654
  %656 = vset.pattern.permute.xlu0 0
  %657 = vperm.xlu0 %656, %v532
  %v658 = vpop.permute.xlu0 %657
  %659 = vset.pattern.permute.xlu0 0
  %660 = vperm.xlu0 %659, %v533
  %v661 = vpop.permute.xlu0 %660
  %v662 = vlaneseq
  %v663 = vand.u32 %v662, 127
  %v664 = vlaneseq
  %v665 = vshrl.u32 %v664, 7
  %v666 = vsub.s32 %v663, %v665
  %v667 = vrot.slane %v568, %v666
  %v668 = vadd.s32 %v663, 4294967288
  %v669 = vlaneseq
  %v670 = vshrl.u32 %v669, 7
  %v671 = vsub.s32 %v668, %v670
  %v672 = vrot.slane %v571, %v671
  %vm673 = vcmask 130112
  %v674 = vsel %vm673, %v672, %v667
  %v675 = vadd.s32 %v663, 4294967280
  %v676 = vlaneseq
  %v677 = vshrl.u32 %v676, 7
  %v678 = vsub.s32 %v675, %v677
  %v679 = vrot.slane %v574, %v678
  %vm680 = vcmask 195712
  %v681 = vsel %vm680, %v679, %v674
  %v682 = vadd.s32 %v663, 4294967272
  %v683 = vlaneseq
  %v684 = vshrl.u32 %v683, 7
  %v685 = vsub.s32 %v682, %v684
  %v686 = vrot.slane %v577, %v685
  %vm687 = vcmask 261312
  %v688 = vsel %vm687, %v686, %v681
  %v689 = vlaneseq
  %v690 = vshrl.u32 %v689, 7
  %v691 = vsub.s32 %v663, %v690
  %v692 = vrot.slane %v580, %v691
  %v693 = vlaneseq
  %v694 = vshrl.u32 %v693, 7
  %v695 = vsub.s32 %v668, %v694
  %v696 = vrot.slane %v583, %v695
  %v697 = vsel %vm673, %v696, %v692
  %v698 = vlaneseq
  %v699 = vshrl.u32 %v698, 7
  %v700 = vsub.s32 %v675, %v699
  %v701 = vrot.slane %v586, %v700
  %v702 = vsel %vm680, %v701, %v697
  %v703 = vlaneseq
  %v704 = vshrl.u32 %v703, 7
  %v705 = vsub.s32 %v682, %v704
  %v706 = vrot.slane %v589, %v705
  %v707 = vsel %vm687, %v706, %v702
  %v708 = vlaneseq
  %v709 = vshrl.u32 %v708, 7
  %v710 = vsub.s32 %v663, %v709
  %v711 = vrot.slane %v592, %v710
  %v712 = vlaneseq
  %v713 = vshrl.u32 %v712, 7
  %v714 = vsub.s32 %v668, %v713
  %v715 = vrot.slane %v595, %v714
  %v716 = vsel %vm673, %v715, %v711
  %v717 = vlaneseq
  %v718 = vshrl.u32 %v717, 7
  %v719 = vsub.s32 %v675, %v718
  %v720 = vrot.slane %v598, %v719
  %v721 = vsel %vm680, %v720, %v716
  %v722 = vlaneseq
  %v723 = vshrl.u32 %v722, 7
  %v724 = vsub.s32 %v682, %v723
  %v725 = vrot.slane %v601, %v724
  %v726 = vsel %vm687, %v725, %v721
  %v727 = vlaneseq
  %v728 = vshrl.u32 %v727, 7
  %v729 = vsub.s32 %v663, %v728
  %v730 = vrot.slane %v604, %v729
  %v731 = vlaneseq
  %v732 = vshrl.u32 %v731, 7
  %v733 = vsub.s32 %v668, %v732
  %v734 = vrot.slane %v607, %v733
  %v735 = vsel %vm673, %v734, %v730
  %v736 = vlaneseq
  %v737 = vshrl.u32 %v736, 7
  %v738 = vsub.s32 %v675, %v737
  %v739 = vrot.slane %v610, %v738
  %v740 = vsel %vm680, %v739, %v735
  %v741 = vlaneseq
  %v742 = vshrl.u32 %v741, 7
  %v743 = vsub.s32 %v682, %v742
  %v744 = vrot.slane %v613, %v743
  %v745 = vsel %vm687, %v744, %v740
  %v746 = vlaneseq
  %v747 = vshrl.u32 %v746, 7
  %v748 = vsub.s32 %v663, %v747
  %v749 = vrot.slane %v616, %v748
  %v750 = vlaneseq
  %v751 = vshrl.u32 %v750, 7
  %v752 = vsub.s32 %v668, %v751
  %v753 = vrot.slane %v619, %v752
  %v754 = vsel %vm673, %v753, %v749
  %v755 = vlaneseq
  %v756 = vshrl.u32 %v755, 7
  %v757 = vsub.s32 %v675, %v756
  %v758 = vrot.slane %v622, %v757
  %v759 = vsel %vm680, %v758, %v754
  %v760 = vlaneseq
  %v761 = vshrl.u32 %v760, 7
  %v762 = vsub.s32 %v682, %v761
  %v763 = vrot.slane %v625, %v762
  %v764 = vsel %vm687, %v763, %v759
  %v765 = vlaneseq
  %v766 = vshrl.u32 %v765, 7
  %v767 = vsub.s32 %v663, %v766
  %v768 = vrot.slane %v628, %v767
  %v769 = vlaneseq
  %v770 = vshrl.u32 %v769, 7
  %v771 = vsub.s32 %v668, %v770
  %v772 = vrot.slane %v631, %v771
  %v773 = vsel %vm673, %v772, %v768
  %v774 = vlaneseq
  %v775 = vshrl.u32 %v774, 7
  %v776 = vsub.s32 %v675, %v775
  %v777 = vrot.slane %v634, %v776
  %v778 = vsel %vm680, %v777, %v773
  %v779 = vlaneseq
  %v780 = vshrl.u32 %v779, 7
  %v781 = vsub.s32 %v682, %v780
  %v782 = vrot.slane %v637, %v781
  %v783 = vsel %vm687, %v782, %v778
  %v784 = vlaneseq
  %v785 = vshrl.u32 %v784, 7
  %v786 = vsub.s32 %v663, %v785
  %v787 = vrot.slane %v640, %v786
  %v788 = vlaneseq
  %v789 = vshrl.u32 %v788, 7
  %v790 = vsub.s32 %v668, %v789
  %v791 = vrot.slane %v643, %v790
  %v792 = vsel %vm673, %v791, %v787
  %v793 = vlaneseq
  %v794 = vshrl.u32 %v793, 7
  %v795 = vsub.s32 %v675, %v794
  %v796 = vrot.slane %v646, %v795
  %v797 = vsel %vm680, %v796, %v792
  %v798 = vlaneseq
  %v799 = vshrl.u32 %v798, 7
  %v800 = vsub.s32 %v682, %v799
  %v801 = vrot.slane %v649, %v800
  %v802 = vsel %vm687, %v801, %v797
  %v803 = vlaneseq
  %v804 = vshrl.u32 %v803, 7
  %v805 = vsub.s32 %v663, %v804
  %v806 = vrot.slane %v652, %v805
  %v807 = vlaneseq
  %v808 = vshrl.u32 %v807, 7
  %v809 = vsub.s32 %v668, %v808
  %v810 = vrot.slane %v655, %v809
  %v811 = vsel %vm673, %v810, %v806
  %v812 = vlaneseq
  %v813 = vshrl.u32 %v812, 7
  %v814 = vsub.s32 %v675, %v813
  %v815 = vrot.slane %v658, %v814
  %v816 = vsel %vm680, %v815, %v811
  %v817 = vlaneseq
  %v818 = vshrl.u32 %v817, 7
  %v819 = vsub.s32 %v682, %v818
  %v820 = vrot.slane %v661, %v819
  %v821 = vsel %vm687, %v820, %v816
  %v822 = vsel %vm348, %v707, %v688
  %v823 = vsel %vm351, %v726, %v822
  %v824 = vsel %vm354, %v745, %v823
  %v825 = vsel %vm357, %v764, %v824
  %v826 = vsel %vm360, %v783, %v825
  %v827 = vsel %vm363, %v802, %v826
  %v828 = vsel %vm366, %v821, %v827
  %vm830 = vcmask 261120
  %831 = vst.msk [vmem:[%s7] sm:$0xff] %vm830, %v828
  %v832 = vld [vmem:[%s3] sm:$0xff]
  %v833 = vld [vmem:[%s3 + $0x8] sm:$0xff]
  %v834 = vld [vmem:[%s3 + $0x10] sm:$0xff]
  %v835 = vld [vmem:[%s3 + $0x18] sm:$0xff]
  %v836 = vmul.f32 %v832, %v30
  %v837 = vmul.f32 %v833, %v31
  %v838 = vmul.f32 %v834, %v32
  %v839 = vmul.f32 %v835, %v33
  %v840 = vmul.f32 %v832, %v34
  %v841 = vmul.f32 %v833, %v35
  %v842 = vmul.f32 %v834, %v36
  %v843 = vmul.f32 %v835, %v37
  %v844 = vmul.f32 %v832, %v38
  %v845 = vmul.f32 %v833, %v39
  %v846 = vmul.f32 %v834, %v40
  %v847 = vmul.f32 %v835, %v41
  %v848 = vmul.f32 %v832, %v42
  %v849 = vmul.f32 %v833, %v43
  %v850 = vmul.f32 %v834, %v44
  %v851 = vmul.f32 %v835, %v45
  %v852 = vmul.f32 %v832, %v46
  %v853 = vmul.f32 %v833, %v47
  %v854 = vmul.f32 %v834, %v48
  %v855 = vmul.f32 %v835, %v49
  %v856 = vmul.f32 %v832, %v50
  %v857 = vmul.f32 %v833, %v51
  %v858 = vmul.f32 %v834, %v52
  %v859 = vmul.f32 %v835, %v53
  %v860 = vmul.f32 %v832, %v54
  %v861 = vmul.f32 %v833, %v55
  %v862 = vmul.f32 %v834, %v56
  %v863 = vmul.f32 %v835, %v57
  %v864 = vmul.f32 %v832, %v58
  %v865 = vmul.f32 %v833, %v59
  %v866 = vmul.f32 %v834, %v60
  %v867 = vmul.f32 %v835, %v61
  %v868 = vld [vmem:[%s4] sm:$0xff]
  %v869 = vld [vmem:[%s4 + $0x8] sm:$0xff]
  %v870 = vld [vmem:[%s4 + $0x10] sm:$0xff]
  %v871 = vld [vmem:[%s4 + $0x18] sm:$0xff]
  %v904 = vmul.f32 %v568, %v151
  %v905 = vmul.f32 %v571, %v151
  %v906 = vmul.f32 %v574, %v151
  %v907 = vmul.f32 %v577, %v151
  %v908 = vmul.f32 %v580, %v155
  %v909 = vmul.f32 %v583, %v155
  %v910 = vmul.f32 %v586, %v155
  %v911 = vmul.f32 %v589, %v155
  %v912 = vmul.f32 %v592, %v159
  %v913 = vmul.f32 %v595, %v159
  %v914 = vmul.f32 %v598, %v159
  %v915 = vmul.f32 %v601, %v159
  %v916 = vmul.f32 %v604, %v163
  %v917 = vmul.f32 %v607, %v163
  %v918 = vmul.f32 %v610, %v163
  %v919 = vmul.f32 %v613, %v163
  %v920 = vmul.f32 %v616, %v167
  %v921 = vmul.f32 %v619, %v167
  %v922 = vmul.f32 %v622, %v167
  %v923 = vmul.f32 %v625, %v167
  %v924 = vmul.f32 %v628, %v171
  %v925 = vmul.f32 %v631, %v171
  %v926 = vmul.f32 %v634, %v171
  %v927 = vmul.f32 %v637, %v171
  %v928 = vmul.f32 %v640, %v175
  %v929 = vmul.f32 %v643, %v175
  %v930 = vmul.f32 %v646, %v175
  %v931 = vmul.f32 %v649, %v175
  %v932 = vmul.f32 %v652, %v179
  %v933 = vmul.f32 %v655, %v179
  %v934 = vmul.f32 %v658, %v179
  %v935 = vmul.f32 %v661, %v179
  %v936 = vmul.f32 %v868, %v904
  %v937 = vmul.f32 %v869, %v905
  %v938 = vmul.f32 %v870, %v906
  %v939 = vmul.f32 %v871, %v907
  %v940 = vmul.f32 %v868, %v908
  %v941 = vmul.f32 %v869, %v909
  %v942 = vmul.f32 %v870, %v910
  %v943 = vmul.f32 %v871, %v911
  %v944 = vmul.f32 %v868, %v912
  %v945 = vmul.f32 %v869, %v913
  %v946 = vmul.f32 %v870, %v914
  %v947 = vmul.f32 %v871, %v915
  %v948 = vmul.f32 %v868, %v916
  %v949 = vmul.f32 %v869, %v917
  %v950 = vmul.f32 %v870, %v918
  %v951 = vmul.f32 %v871, %v919
  %v952 = vmul.f32 %v868, %v920
  %v953 = vmul.f32 %v869, %v921
  %v954 = vmul.f32 %v870, %v922
  %v955 = vmul.f32 %v871, %v923
  %v956 = vmul.f32 %v868, %v924
  %v957 = vmul.f32 %v869, %v925
  %v958 = vmul.f32 %v870, %v926
  %v959 = vmul.f32 %v871, %v927
  %v960 = vmul.f32 %v868, %v928
  %v961 = vmul.f32 %v869, %v929
  %v962 = vmul.f32 %v870, %v930
  %v963 = vmul.f32 %v871, %v931
  %v964 = vmul.f32 %v868, %v932
  %v965 = vmul.f32 %v869, %v933
  %v966 = vmul.f32 %v870, %v934
  %v967 = vmul.f32 %v871, %v935
  %v968 = vadd.f32 %v836, %v936
  %v969 = vadd.f32 %v837, %v937
  %v970 = vadd.f32 %v838, %v938
  %v971 = vadd.f32 %v839, %v939
  %v972 = vadd.f32 %v840, %v940
  %v973 = vadd.f32 %v841, %v941
  %v974 = vadd.f32 %v842, %v942
  %v975 = vadd.f32 %v843, %v943
  %v976 = vadd.f32 %v844, %v944
  %v977 = vadd.f32 %v845, %v945
  %v978 = vadd.f32 %v846, %v946
  %v979 = vadd.f32 %v847, %v947
  %v980 = vadd.f32 %v848, %v948
  %v981 = vadd.f32 %v849, %v949
  %v982 = vadd.f32 %v850, %v950
  %v983 = vadd.f32 %v851, %v951
  %v984 = vadd.f32 %v852, %v952
  %v985 = vadd.f32 %v853, %v953
  %v986 = vadd.f32 %v854, %v954
  %v987 = vadd.f32 %v855, %v955
  %v988 = vadd.f32 %v856, %v956
  %v989 = vadd.f32 %v857, %v957
  %v990 = vadd.f32 %v858, %v958
  %v991 = vadd.f32 %v859, %v959
  %v992 = vadd.f32 %v860, %v960
  %v993 = vadd.f32 %v861, %v961
  %v994 = vadd.f32 %v862, %v962
  %v995 = vadd.f32 %v863, %v963
  %v996 = vadd.f32 %v864, %v964
  %v997 = vadd.f32 %v865, %v965
  %v998 = vadd.f32 %v866, %v966
  %v999 = vadd.f32 %v867, %v967
  %1000 = vst [vmem:[%s8] sm:$0xff] %v968
  %1001 = vst [vmem:[%s8 + $0x8] sm:$0xff] %v969
  %1002 = vst [vmem:[%s8 + $0x10] sm:$0xff] %v970
  %1003 = vst [vmem:[%s8 + $0x18] sm:$0xff] %v971
  %1004 = vst [vmem:[%s8 + $0x20] sm:$0xff] %v972
  %1005 = vst [vmem:[%s8 + $0x28] sm:$0xff] %v973
  %1006 = vst [vmem:[%s8 + $0x30] sm:$0xff] %v974
  %1007 = vst [vmem:[%s8 + $0x38] sm:$0xff] %v975
  %1008 = vst [vmem:[%s8 + $0x40] sm:$0xff] %v976
  %1009 = vst [vmem:[%s8 + $0x48] sm:$0xff] %v977
  %1010 = vst [vmem:[%s8 + $0x50] sm:$0xff] %v978
  %1011 = vst [vmem:[%s8 + $0x58] sm:$0xff] %v979
  %1012 = vst [vmem:[%s8 + $0x60] sm:$0xff] %v980
  %1013 = vst [vmem:[%s8 + $0x68] sm:$0xff] %v981
  %1014 = vst [vmem:[%s8 + $0x70] sm:$0xff] %v982
  %1015 = vst [vmem:[%s8 + $0x78] sm:$0xff] %v983
  %1016 = vst [vmem:[%s8 + $0x80] sm:$0xff] %v984
  %1017 = vst [vmem:[%s8 + $0x88] sm:$0xff] %v985
  %1018 = vst [vmem:[%s8 + $0x90] sm:$0xff] %v986
  %1019 = vst [vmem:[%s8 + $0x98] sm:$0xff] %v987
  %1020 = vst [vmem:[%s8 + $0xa0] sm:$0xff] %v988
  %1021 = vst [vmem:[%s8 + $0xa8] sm:$0xff] %v989
  %1022 = vst [vmem:[%s8 + $0xb0] sm:$0xff] %v990
  %1023 = vst [vmem:[%s8 + $0xb8] sm:$0xff] %v991
  %1024 = vst [vmem:[%s8 + $0xc0] sm:$0xff] %v992
  %1025 = vst [vmem:[%s8 + $0xc8] sm:$0xff] %v993
  %1026 = vst [vmem:[%s8 + $0xd0] sm:$0xff] %v994
  %1027 = vst [vmem:[%s8 + $0xd8] sm:$0xff] %v995
  %1028 = vst [vmem:[%s8 + $0xe0] sm:$0xff] %v996
  %1029 = vst [vmem:[%s8 + $0xe8] sm:$0xff] %v997
  %1030 = vst [vmem:[%s8 + $0xf0] sm:$0xff] %v998
  %1031 = vst [vmem:[%s8 + $0xf8] sm:$0xff] %v999
  // Predicated region
  $region34: #{_stpn_forward.1} parent=0 // pred_check
    _
  $region35: #{_stpn_forward.1} parent=0 // pred_check_branch
    %1033 = sbr.rel (0) target = $region37
  $region36: #{_stpn_forward.1} parent=0 // pred_region
    _
  $region37: #{_stpn_forward.1} parent=0 // pred_fallthru
    _
  // Predicated region
  $region38: #{_stpn_forward.1} parent=0 // pred_check
    _
  $region39: #{_stpn_forward.1} parent=0 // pred_check_branch
    %1035 = sbr.rel (0) target = $region41
  $region40: #{_stpn_forward.1} parent=0 // pred_region
    _
  $region41: #{_stpn_forward.1} parent=0 // pred_fallthru
    _
  // Predicated region
  $region42: #{_stpn_forward.1} parent=0 // pred_check
    _
  $region43: #{_stpn_forward.1} parent=0 // pred_check_branch
    %1037 = sbr.rel (0) target = $region45
  $region44: #{_stpn_forward.1} parent=0 // pred_region
    _
  $region45: #{_stpn_forward.1} parent=0 // pred_fallthru
    _
  // Predicated region
  $region46: #{_stpn_forward.1} parent=0 // pred_check
    _
  $region47: #{_stpn_forward.1} parent=0 // pred_check_branch
    %1039 = sbr.rel (0) target = $region49
  $region48: #{_stpn_forward.1} parent=0 // pred_region
    _
  $region49: #{_stpn_forward.1} parent=0 // pred_fallthru
    _
  // Predicated region
  $region50: #{_stpn_forward.1} parent=0 // pred_check
    _
  $region51: #{_stpn_forward.1} parent=0 // pred_check_branch
    %1041 = sbr.rel (0) target = $region53
  $region52: #{_stpn_forward.1} parent=0 // pred_region
    _
  $region53: #{_stpn_forward.1} parent=0 // pred_fallthru
    _
  // Predicated region
  $region54: #{_stpn_forward.1} parent=0 // pred_check
    _
  $region55: #{_stpn_forward.1} parent=0 // pred_check_branch
    %1043 = sbr.rel (0) target = $region57
  $region56: #{_stpn_forward.1} parent=0 // pred_region
    _
  $region57: #{_stpn_forward.1} parent=0 // pred_fallthru
    _

</llo_original>
